<compile_context>
chip_gen: v7x
topology: tpu7x:2x2x1
jax: 0.10.0
libtpu: 0.0.40
codegen_flags: <defaults>
</compile_context>

<pallas_src>
import functools

import jax
import jax.numpy as jnp
from jax.experimental import pallas as pl
from jax.experimental.pallas import tpu as pltpu


# ----------------------------------------------------------------------------
# helpers
# ----------------------------------------------------------------------------
def _round_up(x, m):
    return (x + m - 1) // m * m


def _cdiv(a, b):
    return -(-a // b)


def _pad_rows(a, rows):
    pad = rows - a.shape[0]
    if pad:
        a = jnp.pad(a, ((0, pad), (0, 0)))
    return a


def _swish(x):
    # swish / SiLU: x * sigmoid(x); lax.logistic keeps it on the EUP slot.
    return x * jax.nn.sigmoid(x)


# ----------------------------------------------------------------------------
# Kernel 1: segment sum (torch_scatter.scatter_add(h, batch, dim=0))
#   one-hot(batch) @ h on the MXU; grid = (segment blocks, node blocks).
# ----------------------------------------------------------------------------
def _segment_sum_kernel(seg_ref, h_ref, o_ref, *, seg_block):
    @pl.when(pl.program_id(1) == 0)
    def _():
        o_ref[...] = jnp.zeros_like(o_ref)

    seg = seg_ref[...]                                          # (1, tn) int32
    s0 = pl.program_id(0) * seg_block
    ids = s0 + jax.lax.broadcasted_iota(jnp.int32, (seg_block, seg.shape[1]), 0)
    onehot = (seg == ids).astype(jnp.bfloat16)                  # (seg_block, tn)
    o_ref[...] += jnp.dot(onehot, h_ref[...],
                          preferred_element_type=jnp.float32)   # (seg_block, D)


def segment_sum(h, seg_ids, num_segments, *, tn=2048, seg_block_max=512):
    n, d = h.shape
    bs = min(_round_up(max(num_segments, 8), 8), _round_up(seg_block_max, 8))
    b_pad = _round_up(max(num_segments, 8), bs)
    tn = min(tn, _round_up(n, 128))            # lane-dense (1, tn) index tile
    n_pad = _round_up(n, tn)

    h_p = _pad_rows(h, n_pad).astype(jnp.bfloat16)
    seg_p = jnp.pad(seg_ids.astype(jnp.int32), (0, n_pad - n),
                    constant_values=-1).reshape(1, n_pad)       # -1 never matches

    out = pl.pallas_call(
        functools.partial(_segment_sum_kernel, seg_block=bs),
        out_shape=jax.ShapeDtypeStruct((b_pad, d), jnp.float32),
        grid_spec=pl.GridSpec(
            grid=(b_pad // bs, n_pad // tn),
            in_specs=[pl.BlockSpec((1, tn), lambda s, k: (0, k)),
                      pl.BlockSpec((tn, d), lambda s, k: (k, 0))],
            out_specs=pl.BlockSpec((bs, d), lambda s, k: (s, 0)),
        ),
        compiler_params=pltpu.CompilerParams(
            dimension_semantics=("parallel", "arbitrary")),
    )(seg_p, h_p)
    return out[:num_segments]


# ----------------------------------------------------------------------------
# Kernel 2: fully fused bond head (bf16 matmuls, f32 accumulation/epilogue)
#   h_bond = pairMLP([hs,he]) + pairMLP([he,hs])         (N_hidden_layers=1 MLP)
#   out    = property_predictor([h_bond, h_agg])         (N_hidden_layers=2 MLP)
# ----------------------------------------------------------------------------
def _bond_head_kernel(hs_ref, he_ref, hg_ref,
                      pw1_ref, pb1_ref, pw2_ref, pb2_ref,
                      qw1_ref, qb1_ref, qw2_ref, qb2_ref, qw3_ref, qb3_ref,
                      o_ref, *, hidden):
    H = hidden
    hs = hs_ref[...]                           # (tm, D) bf16
    he = he_ref[...]
    hg = hg_ref[...]
    pb1 = pb1_ref[...]                         # (1, H) f32

    # --- pairwise permutation-invariant MLP ---------------------------------
    # Layer 1: one (D, 2H) weight [W_a | W_b]; two N=2H matmuls cover both
    # permutation orders via lane sub-blocks.
    ra = jnp.dot(hs, pw1_ref[...], preferred_element_type=jnp.float32)   # (tm, 2H)
    rb = jnp.dot(he, pw1_ref[...], preferred_element_type=jnp.float32)
    s1 = ra[:, :H] + rb[:, H:] + pb1           # order (hs, he)
    s2 = rb[:, :H] + ra[:, H:] + pb1           # order (he, hs)
    # Layer 2 is shared -> sum activations first, single matmul.
    u = (_swish(s1) + _swish(s2)).astype(jnp.bfloat16)
    h_bond = (jnp.dot(u, pw2_ref[...], preferred_element_type=jnp.float32)
              + 2.0 * pb2_ref[...])            # (tm, D) f32

    # --- property predictor: (2D -> H) swish (H -> H) swish (H -> out_pad) --
    x = jnp.concatenate([h_bond.astype(jnp.bfloat16), hg], axis=-1)      # (tm, 2D)
    t = jnp.dot(x, qw1_ref[...], preferred_element_type=jnp.float32) + qb1_ref[...]
    t = _swish(t).astype(jnp.bfloat16)
    t = jnp.dot(t, qw2_ref[...], preferred_element_type=jnp.float32) + qb2_ref[...]
    t = _swish(t).astype(jnp.bfloat16)
    t = jnp.dot(t, qw3_ref[...], preferred_element_type=jnp.float32) + qb3_ref[...]
    o_ref[...] = t.astype(o_ref.dtype)


def bond_head(h_start, h_end, h_agg, pair_params, pred_params,
              *, tm_max=512, min_grid=2):
    B, D = h_start.shape
    (pw1, pb1), (pw2, pb2) = pair_params
    (qw1, qb1), (qw2, qb2), (qw3, qb3) = pred_params
    H = pw1.shape[1]
    n_out = qw3.shape[1]
    n_out_pad = _round_up(n_out, 128)          # lane-dense output stores

    # cat([a,b]) @ W == a @ W[:D] + b @ W[D:]; fold into one (D, 2H) weight.
    pw1cat = jnp.concatenate([pw1[:D], pw1[D:]], axis=1)
    # zero-pad the final (narrow) layer out to 128 lanes; padded cols stay 0
    qw3p = jnp.pad(qw3, ((0, 0), (0, n_out_pad - n_out)))
    qb3p = jnp.pad(qb3, (0, n_out_pad - n_out))

    # Row tile: minimal padding waste, >= min_grid blocks when B is large
    # enough (keeps both v7x TensorCores busy via the "parallel" axis).
    n_blk = max(1, _cdiv(B, tm_max))
    if n_blk < min_grid and B > 16:
        n_blk = min_grid
    tm = _round_up(_cdiv(B, n_blk), 8)
    b_pad = _round_up(B, tm)

    bf = jnp.bfloat16
    f32 = jnp.float32
    hs = _pad_rows(h_start.astype(bf), b_pad)
    he = _pad_rows(h_end.astype(bf), b_pad)
    hg = _pad_rows(h_agg.astype(bf), b_pad)

    def row_spec(shape):
        return pl.BlockSpec(shape, lambda i: (i, 0))

    def fix_spec(shape):
        return pl.BlockSpec(shape, lambda i: (0, 0))

    out = pl.pallas_call(
        functools.partial(_bond_head_kernel, hidden=H),
        out_shape=jax.ShapeDtypeStruct((b_pad, n_out_pad), jnp.float32),
        grid_spec=pl.GridSpec(
            grid=(b_pad // tm,),
            in_specs=[
                row_spec((tm, D)), row_spec((tm, D)), row_spec((tm, D)),
                # pairwise MLP weights (VMEM-resident across all row tiles)
                fix_spec((D, 2 * H)), fix_spec((1, H)),
                fix_spec((H, D)), fix_spec((1, D)),
                # property-predictor weights
                fix_spec((2 * D, H)), fix_spec((1, H)),
                fix_spec((H, H)), fix_spec((1, H)),
                fix_spec((H, n_out_pad)), fix_spec((1, n_out_pad)),
            ],
            out_specs=row_spec((tm, n_out_pad)),
        ),
        compiler_params=pltpu.CompilerParams(
            dimension_semantics=("parallel",)),
    )(hs, he, hg,
      pw1cat.astype(bf), pb1.reshape(1, H).astype(f32),
      pw2.astype(bf), pb2.reshape(1, D).astype(f32),
      qw1.astype(bf), qb1.reshape(1, H).astype(f32),
      qw2.astype(bf), qb2.reshape(1, H).astype(f32),
      qw3p.astype(bf), qb3p.reshape(1, n_out_pad).astype(f32))
    return out[:B, :n_out]


# ----------------------------------------------------------------------------
# GNN3D bond-property head wrapper
# ----------------------------------------------------------------------------
def gnn3d_bond_head(h, batch, start_idx, end_idx, pair_params, pred_params):
    """predict_bond_properties(h, batch, start_idx, end_idx) w/o ensemble pooling.

    NOTE: like the original PyTorch code (torch.cat([h_bond, h_agg], dim=1)),
    this assumes one selected bond per molecule with batch[start_idx[i]] == i.
    """
    num_bonds = int(start_idx.shape[0])        # one selected bond per molecule
    h_agg = segment_sum(h, batch, num_bonds)               # Pallas scatter_add
    h_start = jnp.take(h, start_idx, axis=0)               # plain XLA row gathers
    h_end = jnp.take(h, end_idx, axis=0)
    return bond_head(h_start, h_end, h_agg, pair_params, pred_params)


# ----------------------------------------------------------------------------
# Parameter init mirroring torch.nn.Linear (weights stored transposed: (in,out))
# ----------------------------------------------------------------------------
def init_mlp_params(key, input_channels, hidden_channels, output_channels,
                    n_hidden_layers=2):
    def linear_params(k, fan_in, fan_out):
        kw, kb = jax.random.split(k)
        bound = 1.0 / jnp.sqrt(fan_in)
        w = jax.random.uniform(kw, (fan_in, fan_out), jnp.float32, -bound, bound)
        b = jax.random.uniform(kb, (fan_out,), jnp.float32, -bound, bound)
        return w, b

    params = []
    if n_hidden_layers == 0:
        params.append(linear_params(key, input_channels, output_channels))
        return params
    keys = jax.random.split(key, n_hidden_layers + 1)
    params.append(linear_params(keys[0], input_channels, hidden_channels))
    for i in range(n_hidden_layers - 1):
        params.append(linear_params(keys[1 + i], hidden_channels, hidden_channels))
    params.append(linear_params(keys[-1], hidden_channels, output_channels))
    return params


# ----------------------------------------------------------------------------
if __name__ == "__main__":
    D = 128        # out_emb_channels (GNN3D default)
    H = 128        # hidden_channels  (GNN3D default)
    OUT = 1        # out_channels
    N_NODES = 64   # atoms across all molecules
    N_MOLS = 8     # molecules; one selected bond per molecule

    key = jax.random.PRNGKey(0)
    kh, kpair, kpred = jax.random.split(key, 3)

    # backbone output stand-in (see TODO at top)
    h = jax.random.normal(kh, (N_NODES, D), jnp.float32)
    batch = jnp.repeat(jnp.arange(N_MOLS, dtype=jnp.int32), N_NODES // N_MOLS)
    start_idx = jnp.arange(N_MOLS, dtype=jnp.int32) * (N_NODES // N_MOLS)
    end_idx = start_idx + 1

    # pairwise_permutation_invariant_MLP: MLP(2D, H, D, swish, N_hidden_layers=1)
    pair_params = init_mlp_params(kpair, 2 * D, H, D, n_hidden_layers=1)
    # property_predictor: MLP(2D, H, OUT, swish, N_hidden_layers=2)
    pred_params = init_mlp_params(kpred, 2 * D, H, OUT, n_hidden_layers=2)

    out = gnn3d_bond_head(h, batch, start_idx, end_idx, pair_params, pred_params)
    out = jax.block_until_ready(out)

    # ---------------- pure-JAX f32 reference ----------------
    def mlp_ref(x, params):
        for (w, b) in params[:-1]:
            z = x @ w + b
            x = z * jax.nn.sigmoid(z)          # swish
        return x @ params[-1][0] + params[-1][1]

    h_agg_ref = jax.ops.segment_sum(h, batch, num_segments=N_MOLS)
    hs_ref, he_ref = h[start_idx], h[end_idx]
    h_bond_ref = (mlp_ref(jnp.concatenate([hs_ref, he_ref], axis=1), pair_params)
                  + mlp_ref(jnp.concatenate([he_ref, hs_ref], axis=1), pair_params))
    out_ref = mlp_ref(jnp.concatenate([h_bond_ref, h_agg_ref], axis=1), pred_params)

    assert out.shape == (N_MOLS, OUT)
    err = float(jnp.max(jnp.abs(out - out_ref)))
    # bf16 matmul operands (f32 accumulation) -> loosened tolerance vs f32 ref
    assert jnp.allclose(out, out_ref, atol=5e-2, rtol=5e-2), err

    print("KERNEL_OK")
</pallas_src>

<mosaic_0001>
module attributes {stable_mosaic.version = 11 : i64} {
  func.func @_segment_sum_kernel(%arg0: i32, %arg1: i32, %arg2: memref<1x128xi32, #tpu.memory_space<vmem>>, %arg3: memref<128x128xbf16, #tpu.memory_space<vmem>>, %arg4: memref<8x128xf32, #tpu.memory_space<vmem>>) attributes {dimension_semantics = [#tpu.dimension_semantics<parallel>, #tpu.dimension_semantics<arbitrary>], iteration_bounds = array<i64: 1, 1>, scalar_prefetch = 0 : i64, scratch_operands = 0 : i64, tpu.core_type = #tpu.core_type<tc>, window_params = [{transform_indices = @transform_0, window_bounds = array<i64: 1, 128>}, {transform_indices = @transform_1, window_bounds = array<i64: 128, 128>}, {transform_indices = @transform_2, window_bounds = array<i64: 8, 128>}]} {
    %c0_i32 = arith.constant 0 : i32
    %0 = arith.cmpi eq, %arg1, %c0_i32 : i32
    %1 = arith.extui %0 : i1 to i32
    %c0_i32_0 = arith.constant 0 : i32
    %2 = arith.cmpi ne, %1, %c0_i32_0 : i32
    scf.if %2 {
      %cst_8 = arith.constant 0.000000e+00 : f32
      %18 = vector.broadcast %cst_8 : f32 to vector<8x128xf32>
      %c0_9 = arith.constant 0 : index
      %c0_10 = arith.constant 0 : index
      %19 = vector.load %arg4[%c0_9, %c0_10] : memref<8x128xf32, #tpu.memory_space<vmem>>, vector<8x128xf32>
      tpu.vector_store %arg4[%c0_9, %c0_10], %18 {strides = array<i32>} : memref<8x128xf32, #tpu.memory_space<vmem>>, vector<8x128xf32>,
    } else {
    }
    %c0 = arith.constant 0 : index
    %c0_1 = arith.constant 0 : index
    %3 = vector.load %arg2[%c0, %c0_1] : memref<1x128xi32, #tpu.memory_space<vmem>>, vector<1x128xi32>
    %c8_i32 = arith.constant 8 : i32
    %4 = arith.muli %arg0, %c8_i32 : i32
    %5 = tpu.iota {dimensions = array<i32: 0>} : vector<8x128xi32>
    %6 = vector.broadcast %4 : i32 to vector<8x128xi32>
    %7 = arith.addi %6, %5 : vector<8x128xi32>
    %8 = vector.broadcast %3 : vector<1x128xi32> to vector<8x128xi32>
    %9 = arith.cmpi eq, %8, %7 : vector<8x128xi32>
    %10 = arith.extui %9 : vector<8x128xi1> to vector<8x128xi32>
    %11 = arith.sitofp %10 : vector<8x128xi32> to vector<8x128xf32>
    %12 = arith.truncf %11 : vector<8x128xf32> to vector<8x128xbf16>
    %c0_2 = arith.constant 0 : index
    %c0_3 = arith.constant 0 : index
    %13 = vector.load %arg4[%c0_2, %c0_3] : memref<8x128xf32, #tpu.memory_space<vmem>>, vector<8x128xf32>
    %c0_4 = arith.constant 0 : index
    %c0_5 = arith.constant 0 : index
    %14 = vector.load %arg3[%c0_4, %c0_5] : memref<128x128xbf16, #tpu.memory_space<vmem>>, vector<128x128xbf16>
    %cst = arith.constant dense<0.000000e+00> : vector<8x128xf32>
    %15 = tpu.matmul %12, %14, %cst {dimension_numbers = #tpu.dot_dimension_numbers<[1], [0], [0], [1], [0, 0, 1, 1], [], []>} : vector<8x128xbf16>, vector<128x128xbf16>, vector<8x128xf32> -> vector<8x128xf32>
    %16 = arith.addf %13, %15 : vector<8x128xf32>
    %c0_6 = arith.constant 0 : index
    %c0_7 = arith.constant 0 : index
    %17 = vector.load %arg4[%c0_6, %c0_7] : memref<8x128xf32, #tpu.memory_space<vmem>>, vector<8x128xf32>
    tpu.vector_store %arg4[%c0_6, %c0_7], %16 {strides = array<i32>} : memref<8x128xf32, #tpu.memory_space<vmem>>, vector<8x128xf32>,
    return
  }
  func.func @transform_0(%arg0: i32, %arg1: i32) -> (i32, i32) {
    %c0_i32 = arith.constant 0 : i32
    %c0_i32_0 = arith.constant 0 : i32
    return %c0_i32, %arg1 : i32, i32
  }
  func.func @transform_1(%arg0: i32, %arg1: i32) -> (i32, i32) {
    %c0_i32 = arith.constant 0 : i32
    %c0_i32_0 = arith.constant 0 : i32
    return %arg1, %c0_i32 : i32, i32
  }
  func.func @transform_2(%arg0: i32, %arg1: i32) -> (i32, i32) {
    %c0_i32 = arith.constant 0 : i32
    %c0_i32_0 = arith.constant 0 : i32
    return %arg0, %c0_i32 : i32, i32
  }
}

</mosaic_0001>

<llo_original>
// kernel: tpu_custom_call.1
$region0: #{tpu_custom_call.1}
  #allocation0 [shape = 'u32[]', space=smem, size = 0x4, offset = 0x4, fixed_abs, tag = 'smem constant byte address 0x4 - core index']
  #allocation1 [shape = 'u32[144,128]{1,0:T(1,128)}', space=vmem, size = 0x12000, scoped, tag = 'internal scratch']
  %s0 = inlined_call_operand.hbm [shape: s32[1,128], index: 0, kind: input, shape index: {}]
  %s1 = inlined_call_operand.hbm [shape: bf16[128,128], index: 1, kind: input, shape index: {}]
  %s2 = inlined_call_operand.hbm [shape: f32[8,128], index: 2, kind: output, shape index: {}]
  %s3 = sld [smem:[#allocation0]]
  $region30: #{tpu_custom_call.1} parent=0
    _
  %s5 = ssub.s32 1, %s3
  %s6 = scalar_select 0, %s5, %s3
  $region1: #{tpu_custom_call.1} parent=0
    #allocation2 [shape = 'u8[512]{0}', space=vmem, size = 0x400, scoped, tag = 'input window, operand 0, single buffered']
    #allocation3 [shape = 's32[1]{0}', space=sflag, size = 0x4, scoped, tag = 'scoped memory for tpu_custom_call.1']
    #allocation4 [shape = 's32[1]{0}', space=sflag, size = 0x4, scoped, tag = 'scoped memory for tpu_custom_call.1']
    #allocation5 [shape = 'u8[32768]{0}', space=vmem, size = 0x8000, scoped, tag = 'input window, operand 1, single buffered']
    #allocation6 [shape = 's32[1]{0}', space=sflag, size = 0x4, scoped, tag = 'scoped memory for tpu_custom_call.1']
    #allocation7 [shape = 'u8[4096]{0}', space=vmem, size = 0x1000, scoped, tag = 'output window, operand 0, single buffered']
    %7 = vsyncpa [#allocation3], 0
    %8 = vsyncpa [#allocation6], 0
    %9 = vsyncpa [#allocation4], 0
    // Predicated region
    $region2: #{tpu_custom_call.1} parent=1 // pred_check
      _
    $region3: #{tpu_custom_call.1} parent=1 // pred_check_branch
      %11 = sbr.rel (0) target = $region5
    $region4: #{tpu_custom_call.1} parent=1 // pred_region
      %s13 = ssub.s32 16, 16
      %14 = vsyncadd [#allocation3], %s13
      %s16 = sshll.u32 [#allocation2], 4
      %s17 = int_to_ptr.vmem [resolvable:$true] %s16
      %19 = dma.hbm_to_vmem [thread:$0]  %s0, 16, %s17, [#allocation3]
    $region5: #{tpu_custom_call.1} parent=1 // pred_fallthru
      _
    // Predicated region
    $region6: #{tpu_custom_call.1} parent=1 // pred_check
      _
    $region7: #{tpu_custom_call.1} parent=1 // pred_check_branch
      %21 = sbr.rel (0) target = $region9
    $region8: #{tpu_custom_call.1} parent=1 // pred_region
      %s23 = ssub.s32 1024, 1024
      %24 = vsyncadd [#allocation6], %s23
      %s25 = sshll.u32 [#allocation5], 4
      %s26 = int_to_ptr.vmem [resolvable:$true] %s25
      %31 = dma.hbm_to_vmem [thread:$0]  %s1, 1024, %s26, [#allocation6], 64, 64, 4
    $region9: #{tpu_custom_call.1} parent=1 // pred_fallthru
      _
    // Predicated region
    $region10: #{tpu_custom_call.1} parent=1 // pred_check
      _
    $region11: #{tpu_custom_call.1} parent=1 // pred_check_branch
      %33 = sbr.rel (0) target = $region13
    $region12: #{tpu_custom_call.1} parent=1 // pred_region
      %34 = dma.done [#allocation3], 16
    $region13: #{tpu_custom_call.1} parent=1 // pred_fallthru
      _
    // Predicated region
    $region14: #{tpu_custom_call.1} parent=1 // pred_check
      _
    $region15: #{tpu_custom_call.1} parent=1 // pred_check_branch
      %36 = sbr.rel (0) target = $region17
    $region16: #{tpu_custom_call.1} parent=1 // pred_region
      %37 = dma.done [#allocation6], 1024
    $region17: #{tpu_custom_call.1} parent=1 // pred_fallthru
      _
    %p39 = scmp.eq.s32.totalorder 0, 0
    // Predicated region
    $region18: #{tpu_custom_call.1} parent=1 // pred_check
      %p40 = pneg %p39
    $region19: #{tpu_custom_call.1} parent=1 // pred_check_branch
      %42 = sbr.rel (%p40) target = $region21
    $region20: #{tpu_custom_call.1} parent=1 // pred_region
      %43 = vst [vmem:[#allocation7] sm:$0xff] 0.0
    $region21: #{tpu_custom_call.1} parent=1 // pred_fallthru
      _
    %v44 = vld [vmem:[#allocation2] sm:$0x1]
    %s45 = smul.u32 0, 8
    %v46 = vlaneseq
    %v47 = vshrl.u32 %v46, 7
    %v48 = vstv %s45
    %v49 = vadd.s32 %v48, %v47
    %v50 = vlaneseq
    %v51 = vshrl.u32 %v50, 7
    %v52 = vsub.s32 0, %v51
    %v53 = vrot.slane %v44, %v52
    %vm54 = vcmp.eq.s32.totalorder %v53, %v49
    %v55 = vsel %vm54, 1, 0
    %v56 = vcvt.s32.f32 %v55
    %v57 = vpack.c.bf16 %v56, %v56
    %v58 = vld [vmem:[#allocation7] sm:$0xff]
    %v59 = vld [vmem:[#allocation5] sm:$0xf]
    %v60 = vld [vmem:[#allocation5 + $0x4] sm:$0xf]
    %v61 = vld [vmem:[#allocation5 + $0x8] sm:$0xf]
    %v62 = vld [vmem:[#allocation5 + $0xc] sm:$0xf]
    %v63 = vld [vmem:[#allocation5 + $0x10] sm:$0xf]
    %v64 = vld [vmem:[#allocation5 + $0x14] sm:$0xf]
    %v65 = vld [vmem:[#allocation5 + $0x18] sm:$0xf]
    %v66 = vld [vmem:[#allocation5 + $0x1c] sm:$0xf]
    %v67 = vld [vmem:[#allocation5 + $0x20] sm:$0xf]
    %v68 = vld [vmem:[#allocation5 + $0x24] sm:$0xf]
    %v69 = vld [vmem:[#allocation5 + $0x28] sm:$0xf]
    %v70 = vld [vmem:[#allocation5 + $0x2c] sm:$0xf]
    %v71 = vld [vmem:[#allocation5 + $0x30] sm:$0xf]
    %v72 = vld [vmem:[#allocation5 + $0x34] sm:$0xf]
    %v73 = vld [vmem:[#allocation5 + $0x38] sm:$0xf]
    %v74 = vld [vmem:[#allocation5 + $0x3c] sm:$0xf]
    %v91 = vunpack.c.l.b16 %v59
    %v92 = vunpack.c.l.b16 %v60
    %v93 = vunpack.c.l.b16 %v61
    %v94 = vunpack.c.l.b16 %v62
    %v95 = vunpack.c.l.b16 %v63
    %v96 = vunpack.c.l.b16 %v64
    %v97 = vunpack.c.l.b16 %v65
    %v98 = vunpack.c.l.b16 %v66
    %v99 = vunpack.c.l.b16 %v67
    %v100 = vunpack.c.l.b16 %v68
    %v101 = vunpack.c.l.b16 %v69
    %v102 = vunpack.c.l.b16 %v70
    %v103 = vunpack.c.l.b16 %v71
    %v104 = vunpack.c.l.b16 %v72
    %v105 = vunpack.c.l.b16 %v73
    %v106 = vunpack.c.l.b16 %v74
    %v107 = vpack.c.b16 %v92, %v91
    %v108 = vpack.c.b16 %v94, %v93
    %v109 = vpack.c.b16 %v96, %v95
    %v110 = vpack.c.b16 %v98, %v97
    %v111 = vpack.c.b16 %v100, %v99
    %v112 = vpack.c.b16 %v102, %v101
    %v113 = vpack.c.b16 %v104, %v103
    %v114 = vpack.c.b16 %v106, %v105
    %123 = vmatprep.subr.bf16.mxu0 0
    %124 = vmatpush1.bf16.msra.mxu0 %v107
    %125 = vmatprep.subr.bf16.mxu0 0
    %126 = vmatpush1.bf16.msra.mxu0 %v108
    %127 = vmatprep.subr.bf16.mxu0 0
    %128 = vmatpush1.bf16.msra.mxu0 %v109
    %129 = vmatprep.subr.bf16.mxu0 0
    %130 = vmatpush1.bf16.msra.mxu0 %v110
    %131 = vmatprep.subr.bf16.mxu0 0
    %132 = vmatpush1.bf16.msra.mxu0 %v111
    %133 = vmatprep.subr.bf16.mxu0 0
    %134 = vmatpush1.bf16.msra.mxu0 %v112
    %135 = vmatprep.subr.bf16.mxu0 0
    %136 = vmatpush1.bf16.msra.mxu0 %v113
    %137 = vmatprep.subr.bf16.mxu0 0
    %138 = vmatpush1.bf16.msra.mxu0 %v114
    %139 = vmatprep.subr.bf16.mxu0 0
    %140 = vmatpush1.bf16.msra.mxu0 0
    %141 = vmatprep.subr.bf16.mxu0 0
    %142 = vmatpush1.bf16.msra.mxu0 0
    %143 = vmatprep.subr.bf16.mxu0 0
    %144 = vmatpush1.bf16.msra.mxu0 0
    %145 = vmatprep.subr.bf16.mxu0 0
    %146 = vmatpush1.bf16.msra.mxu0 0
    %147 = vmatprep.subr.bf16.mxu0 0
    %148 = vmatpush1.bf16.msra.mxu0 0
    %149 = vmatprep.subr.bf16.mxu0 0
    %150 = vmatpush1.bf16.msra.mxu0 0
    %151 = vmatprep.subr.bf16.mxu0 0
    %152 = vmatpush1.bf16.msra.mxu0 0
    %153 = vmatprep.subr.bf16.mxu0 0
    %154 = vmatpush1.bf16.msra.mxu0 0
    %155 = vmatprep.mubr.bf16.mxu0 0
    %156 = vmatmul.mubr.bf16.gmra.mrb[0].mxu0 %v57
    %v157 = vpop.f32.mrb[0].mxu0
    %v158 = vadd.f32 0.0, %v157
    %v159 = vpop.f32.mrb[0].mxu0
    %v160 = vpop.f32.mrb[0].mxu0
    %v161 = vpop.f32.mrb[0].mxu0
    %162 = vdwg.mxu0
    %v163 = vadd.f32 %v58, %v158
    %164 = vst [vmem:[#allocation7] sm:$0xff] %v163
    // Predicated region
    $region22: #{tpu_custom_call.1} parent=1 // pred_check
      _
    $region23: #{tpu_custom_call.1} parent=1 // pred_check_branch
      %166 = sbr.rel (0) target = $region25
    $region24: #{tpu_custom_call.1} parent=1 // pred_region
      %s168 = ssub.s32 128, 128
      %169 = vsyncadd [#allocation4], %s168
      %s171 = sshll.u32 [#allocation7], 4
      %s172 = int_to_ptr.vmem [resolvable:$true] %s171
      %174 = dma.vmem_to_hbm [thread:$0]  %s172, 128, %s2, [#allocation4]
    $region25: #{tpu_custom_call.1} parent=1 // pred_fallthru
      _
    // Predicated region
    $region26: #{tpu_custom_call.1} parent=1 // pred_check
      _
    $region27: #{tpu_custom_call.1} parent=1 // pred_check_branch
      %176 = sbr.rel (0) target = $region29
    $region28: #{tpu_custom_call.1} parent=1 // pred_region
      %177 = dma.done [#allocation4], 128
    $region29: #{tpu_custom_call.1} parent=1 // pred_fallthru
      _
    %178 = vsyncpa [#allocation3], 1
    %179 = vsyncpa [#allocation6], 1
    %180 = vsyncpa [#allocation4], 1

</llo_original>
